<compile_context>
chip_gen: v5e
topology: v5e:2x2
jax: 0.10.0
libtpu: 0.0.40
codegen_flags: <defaults>
</compile_context>

<pallas_src>
import functools

import jax
import jax.numpy as jnp
from jax.experimental import pallas as pl
from jax.experimental.pallas import tpu as pltpu

EPSILON = 1e-8
SCALE_INIT = 1.0
_LANE = 128


def _round_up(x: int, m: int) -> int:
    return ((x + m - 1) // m) * m


def _sublane_pack(itemsize: int) -> int:
    # Rows per packed sublane tile: 8 for f32, 16 for bf16, 32 for int8/fp8.
    return max(8, 32 // max(1, itemsize))


def _tpu_caps():
    """Best-effort (VMEM bytes, TensorCores per chip), conservative fallbacks."""
    kind = ""
    try:
        kind = jax.devices()[0].device_kind.lower()
    except Exception:
        pass
    single_tc = any(t in kind for t in ("v5e", "v5 lite", "v6e", "v6 lite", "lite"))
    num_tc = 1 if single_tc else 2
    # Heuristic upper bound: 128 MiB on single-TC (v5e/v6e), 64 MiB otherwise (v7x).
    vmem_bytes = (128 << 20) if single_tc else (64 << 20)
    try:
        info = pltpu.get_tpu_info()
        vb = int(getattr(info, "vmem_capacity_bytes", 0) or 0)
        if vb > 0:
            vmem_bytes = min(vmem_bytes, vb)   # only ever shrink -> always safe
    except Exception:
        pass
    return vmem_bytes, num_tc


def _choose_block_rows(n_rows: int, lane_width: int, itemsize: int,
                       vmem_bytes: int, num_tc: int) -> int:
    """VMEM-budgeted row tile using the *padded* lane layout."""
    padded_lanes = _round_up(lane_width, _LANE)
    sub = _sublane_pack(itemsize)
    row_io = padded_lanes * itemsize   # one input or output buffer, per row
    row_f32 = padded_lanes * 4         # f32 temporaries, per row
    # 2 in + 2 out double-buffered blocks + ~6 blocks of f32 temporaries
    # (upcast x, x*x, hi/lo, segmented sum, rsqrt, product).
    per_row = 4 * row_io + 6 * row_f32
    budget = int(vmem_bytes * 0.70)
    br = max(sub, (budget // per_row) // sub * sub)
    rows_up = _round_up(n_rows, sub)
    br = min(br, rows_up)
    # Split across TensorCores only when the chip actually has >1 TC (v7x);
    # on v5e/v6e extra grid steps are pure per-step overhead.
    if num_tc > 1 and rows_up >= num_tc * sub:
        per_core = _round_up(-(-rows_up // num_tc), sub)
        br = min(br, per_core)
    # Keep the grid a multiple of num_tc so no core idles on a lone tail block.
    n_blocks = -(-rows_up // br)
    if num_tc > 1 and n_blocks > 1 and n_blocks % num_tc:
        n_blocks = _round_up(n_blocks, num_tc)
        br = max(sub, _round_up(-(-rows_up // n_blocks), sub))
    return br


def _rmsnorm_kernel(x_ref, scale_ref, o_ref, *, inv_hidden, eps):
    """Generic path: the whole feature axis lives on the lane dimension."""
    x = x_ref[...].astype(jnp.float32)
    ms = jnp.sum(x * x, axis=-1, keepdims=True) * inv_hidden
    inv = jax.lax.rsqrt(ms + eps)                     # EUP slot
    o_ref[...] = (x * inv * scale_ref[...]).astype(o_ref.dtype)


def _rmsnorm_folded_kernel(x_ref, scale_ref, seg_ref, o_ref, *, inv_hidden, eps):
    """Lane-dense path: `128/hidden` logical rows packed into the lane axis.

    The per-logical-row (segmented) sum of squares is a matmul with a
    block-diagonal ones matrix on the otherwise-idle MXU.  Squares are split
    into hi/lo bf16 components (two bf16 passes) to keep ~f32 accuracy.
    """
    x = x_ref[...].astype(jnp.float32)
    xsq = x * x
    hi = xsq.astype(jnp.bfloat16)
    lo = (xsq - hi.astype(jnp.float32)).astype(jnp.bfloat16)
    seg = seg_ref[...]
    seg_sum = (jnp.dot(hi, seg, preferred_element_type=jnp.float32)
               + jnp.dot(lo, seg, preferred_element_type=jnp.float32))
    inv = jax.lax.rsqrt(seg_sum * inv_hidden + eps)   # EUP slot
    o_ref[...] = (x * inv * scale_ref[...]).astype(o_ref.dtype)


def advanced_rms_norm(x: jax.Array, scale: jax.Array,
                      *, epsilon: float = EPSILON,
                      block_rows: int | None = None) -> jax.Array:
    """RMS normalization over the last axis: scale * x / sqrt(mean(x^2,-1)+eps)."""
    orig_shape = x.shape
    hidden = int(orig_shape[-1])
    assert scale.shape == (hidden,)

    x2d = x.reshape(-1, hidden)
    rows = x2d.shape[0]
    itemsize = jnp.dtype(x.dtype).itemsize
    vmem_bytes, num_tc = _tpu_caps()
    scale_f32 = scale.astype(jnp.float32)

    fold = _LANE // hidden if (hidden < _LANE and _LANE % hidden == 0) else 1
    # TODO(synk): hidden < 128 that does not divide 128 still takes the
    # lane-sparse generic path; a production version would pad the feature axis.

    if fold > 1:
        rows_padded = _round_up(rows, fold)
        if rows_padded != rows:
            x2d = jnp.pad(x2d, ((0, rows_padded - rows), (0, 0)))
        n_rows = rows_padded // fold
        lane_width = fold * hidden                    # == 128: lane-dense tiles
        x_in = x2d.reshape(n_rows, lane_width)
        scale_in = jnp.tile(scale_f32, fold).reshape(1, lane_width)
        lane = jnp.arange(lane_width, dtype=jnp.int32)
        seg = (lane[:, None] // hidden == lane[None, :] // hidden).astype(jnp.bfloat16)
    else:
        n_rows = rows
        lane_width = hidden
        x_in = x2d
        scale_in = scale_f32.reshape(1, hidden)
        seg = None

    if block_rows is None:
        block_rows = _choose_block_rows(n_rows, lane_width, itemsize,
                                        vmem_bytes, num_tc)

    grid = (pl.cdiv(n_rows, block_rows),)

    # VMEM accounting on the padded layout, incl. f32 temporaries + residents.
    padded_lanes = _round_up(lane_width, _LANE)
    block_io = block_rows * padded_lanes * itemsize
    block_f32 = block_rows * padded_lanes * 4
    resident = padded_lanes * 4 + (2 * padded_lanes * padded_lanes if fold > 1 else 0)
    vmem_limit = 4 * block_io + 6 * block_f32 + resident + (2 << 20)
    vmem_limit = int(max(16 << 20, min(vmem_limit, vmem_bytes - (2 << 20))))

    row_spec = pl.BlockSpec((block_rows, lane_width), lambda i: (i, 0))
    scale_spec = pl.BlockSpec((1, lane_width), lambda i: (0, 0))   # resident

    if fold > 1:
        kernel = functools.partial(_rmsnorm_folded_kernel,
                                   inv_hidden=1.0 / hidden, eps=float(epsilon))
        in_specs = [row_spec, scale_spec,
                    pl.BlockSpec((lane_width, lane_width), lambda i: (0, 0))]
        operands = (x_in, scale_in, seg)
    else:
        kernel = functools.partial(_rmsnorm_kernel,
                                   inv_hidden=1.0 / hidden, eps=float(epsilon))
        in_specs = [row_spec, scale_spec]
        operands = (x_in, scale_in)

    out = pl.pallas_call(
        kernel,
        out_shape=jax.ShapeDtypeStruct((n_rows, lane_width), x.dtype),
        grid_spec=pltpu.PrefetchScalarGridSpec(
            num_scalar_prefetch=0,
            grid=grid,
            in_specs=in_specs,
            out_specs=row_spec,
        ),
        compiler_params=pltpu.CompilerParams(
            dimension_semantics=("parallel",),
            vmem_limit_bytes=vmem_limit,
        ),
    )(*operands)

    if fold > 1:
        out = out.reshape(n_rows * fold, hidden)
        if out.shape[0] != rows:
            out = out[:rows]
    return out.reshape(orig_shape)


def _reference(x, scale):
    xf = x.astype(jnp.float32)
    norm = jnp.sqrt(jnp.mean(xf ** 2, axis=-1, keepdims=True) + EPSILON)
    return (scale.astype(jnp.float32) * (xf / norm)).astype(x.dtype)


if __name__ == "__main__":
    # Shapes consistent with the module: input_dim (hidden) = 32, x = [2, 8, 32].
    batch, seq, hidden = 2, 8, 32
    key = jax.random.PRNGKey(0)
    x = jax.random.normal(key, (batch, seq, hidden), dtype=jnp.float32)
    scale = jnp.ones((hidden,), dtype=jnp.float32) * SCALE_INIT

    y = jax.block_until_ready(advanced_rms_norm(x, scale))
    assert jnp.allclose(y, _reference(x, scale), atol=1e-5, rtol=1e-5), "mismatch"

    # Rows not a multiple of the 128/hidden lane fold (wrapper pad + partial block).
    x2 = jax.random.normal(jax.random.PRNGKey(1), (3, 7, hidden), dtype=jnp.float32)
    y2 = jax.block_until_ready(advanced_rms_norm(x2, scale))
    assert jnp.allclose(y2, _reference(x2, scale), atol=1e-5, rtol=1e-5), "mismatch (fold pad)"

    # hidden >= 128 exercises the generic (already lane-dense) path.
    x3 = jax.random.normal(jax.random.PRNGKey(2), (2, 8, 128), dtype=jnp.float32)
    scale3 = jnp.ones((128,), dtype=jnp.float32) * SCALE_INIT
    y3 = jax.block_until_ready(advanced_rms_norm(x3, scale3))
    assert jnp.allclose(y3, _reference(x3, scale3), atol=1e-5, rtol=1e-5), "mismatch (generic)"

    print("KERNEL_OK")
</pallas_src>

<mosaic_0001>
module attributes {stable_mosaic.version = 11 : i64} {
  func.func @_rmsnorm_folded_kernel(%arg0: i32, %arg1: memref<8x128xf32, #tpu.memory_space<vmem>>, %arg2: memref<1x128xf32, #tpu.memory_space<vmem>>, %arg3: memref<128x128xbf16, #tpu.memory_space<vmem>>, %arg4: memref<8x128xf32, #tpu.memory_space<vmem>>) attributes {dimension_semantics = [#tpu.dimension_semantics<parallel>], iteration_bounds = array<i64: 1>, scalar_prefetch = 0 : i64, scratch_operands = 0 : i64, tpu.core_type = #tpu.core_type<tc>, window_params = [{transform_indices = @transform_0, window_bounds = array<i64: 8, 128>}, {pipeline_mode = #tpu.pipeline_mode<synchronous>, transform_indices = @transform_1, window_bounds = array<i64: 1, 128>}, {pipeline_mode = #tpu.pipeline_mode<synchronous>, transform_indices = @transform_2, window_bounds = array<i64: 128, 128>}, {transform_indices = @transform_3, window_bounds = array<i64: 8, 128>}]} {
    %c0 = arith.constant 0 : index
    %c0_0 = arith.constant 0 : index
    %0 = vector.load %arg1[%c0, %c0_0] : memref<8x128xf32, #tpu.memory_space<vmem>>, vector<8x128xf32>
    %1 = arith.mulf %0, %0 : vector<8x128xf32>
    %2 = arith.truncf %1 : vector<8x128xf32> to vector<8x128xbf16>
    %3 = arith.extf %2 : vector<8x128xbf16> to vector<8x128xf32>
    %4 = arith.subf %1, %3 : vector<8x128xf32>
    %5 = arith.truncf %4 : vector<8x128xf32> to vector<8x128xbf16>
    %c0_1 = arith.constant 0 : index
    %c0_2 = arith.constant 0 : index
    %6 = vector.load %arg3[%c0_1, %c0_2] : memref<128x128xbf16, #tpu.memory_space<vmem>>, vector<128x128xbf16>
    %cst = arith.constant dense<0.000000e+00> : vector<8x128xf32>
    %7 = tpu.matmul %2, %6, %cst {dimension_numbers = #tpu.dot_dimension_numbers<[1], [0], [0], [1], [0, 0, 1, 1], [], []>} : vector<8x128xbf16>, vector<128x128xbf16>, vector<8x128xf32> -> vector<8x128xf32>
    %cst_3 = arith.constant dense<0.000000e+00> : vector<8x128xf32>
    %8 = tpu.matmul %5, %6, %cst_3 {dimension_numbers = #tpu.dot_dimension_numbers<[1], [0], [0], [1], [0, 0, 1, 1], [], []>} : vector<8x128xbf16>, vector<128x128xbf16>, vector<8x128xf32> -> vector<8x128xf32>
    %9 = arith.addf %7, %8 : vector<8x128xf32>
    %cst_4 = arith.constant 3.125000e-02 : f32
    %10 = vector.broadcast %cst_4 : f32 to vector<8x128xf32>
    %11 = arith.mulf %9, %10 : vector<8x128xf32>
    %cst_5 = arith.constant 9.99999993E-9 : f32
    %12 = vector.broadcast %cst_5 : f32 to vector<8x128xf32>
    %13 = arith.addf %11, %12 : vector<8x128xf32>
    %14 = math.rsqrt %13 : vector<8x128xf32>
    %15 = arith.mulf %0, %14 : vector<8x128xf32>
    %c0_6 = arith.constant 0 : index
    %c0_7 = arith.constant 0 : index
    %16 = vector.load %arg2[%c0_6, %c0_7] : memref<1x128xf32, #tpu.memory_space<vmem>>, vector<1x128xf32>
    %17 = vector.broadcast %16 : vector<1x128xf32> to vector<8x128xf32>
    %18 = arith.mulf %15, %17 : vector<8x128xf32>
    %c0_8 = arith.constant 0 : index
    %c0_9 = arith.constant 0 : index
    %19 = vector.load %arg4[%c0_8, %c0_9] : memref<8x128xf32, #tpu.memory_space<vmem>>, vector<8x128xf32>
    tpu.vector_store %arg4[%c0_8, %c0_9], %18 {strides = array<i32>} : memref<8x128xf32, #tpu.memory_space<vmem>>, vector<8x128xf32>,
    return
  }
  func.func @transform_0(%arg0: i32) -> (i32, i32) {
    %c0_i32 = arith.constant 0 : i32
    %c0_i32_0 = arith.constant 0 : i32
    return %arg0, %c0_i32 : i32, i32
  }
  func.func @transform_1(%arg0: i32) -> (i32, i32) {
    %c0_i32 = arith.constant 0 : i32
    %c0_i32_0 = arith.constant 0 : i32
    %c0_i32_1 = arith.constant 0 : i32
    return %c0_i32, %c0_i32_0 : i32, i32
  }
  func.func @transform_2(%arg0: i32) -> (i32, i32) {
    %c0_i32 = arith.constant 0 : i32
    %c0_i32_0 = arith.constant 0 : i32
    %c0_i32_1 = arith.constant 0 : i32
    return %c0_i32, %c0_i32_0 : i32, i32
  }
  func.func @transform_3(%arg0: i32) -> (i32, i32) {
    %c0_i32 = arith.constant 0 : i32
    %c0_i32_0 = arith.constant 0 : i32
    return %arg0, %c0_i32 : i32, i32
  }
}

</mosaic_0001>

<llo_original>
// kernel: tpu_custom_call.1
$region0: #{tpu_custom_call.1}
  #allocation0 [shape = 'u32[]', space=smem, size = 0x4, offset = 0x4, fixed_abs, tag = 'smem constant byte address 0x4 - core index']
  #allocation1 [shape = 'u32[72,128]{1,0:T(1,128)}', space=vmem, size = 0x9000, scoped, tag = 'internal scratch']
  %s0 = inlined_call_operand.hbm [shape: f32[4,128], index: 0, kind: input, shape index: {}]
  %s1 = inlined_call_operand.hbm [shape: f32[1,128], index: 1, kind: input, shape index: {}]
  %s2 = inlined_call_operand.hbm [shape: bf16[128,128], index: 2, kind: input, shape index: {}]
  %s3 = inlined_call_operand.hbm [shape: f32[4,128], index: 3, kind: output, shape index: {}]
  %s4 = sld [smem:[#allocation0]]
  $region34: #{tpu_custom_call.1} parent=0
    _
  %s6 = ssub.s32 1, %s4
  %s7 = scalar_select 0, %s6, %s4
  $region1: #{tpu_custom_call.1} parent=0
    #allocation2 [shape = 'u8[4096]{0}', space=vmem, size = 0x1000, scoped, tag = 'input window, operand 0, single buffered']
    #allocation3 [shape = 's32[1]{0}', space=sflag, size = 0x4, scoped, tag = 'scoped memory for tpu_custom_call.1']
    #allocation4 [shape = 's32[1]{0}', space=sflag, size = 0x4, scoped, tag = 'scoped memory for tpu_custom_call.1']
    #allocation5 [shape = 'u8[512]{0}', space=vmem, size = 0x400, scoped, tag = 'input window, operand 1, single buffered']
    #allocation6 [shape = 's32[1]{0}', space=sflag, size = 0x4, scoped, tag = 'scoped memory for tpu_custom_call.1']
    #allocation7 [shape = 'u8[32768]{0}', space=vmem, size = 0x8000, scoped, tag = 'input window, operand 2, single buffered']
    #allocation8 [shape = 'u8[4096]{0}', space=vmem, size = 0x1000, scoped, tag = 'output window, operand 0, single buffered']
    %8 = vsyncpa [#allocation3], 0
    %9 = vsyncpa [#allocation6], 0
    %10 = vsyncpa [#allocation4], 0
    // Predicated region
    $region2: #{tpu_custom_call.1} parent=1 // pred_check
      _
    $region3: #{tpu_custom_call.1} parent=1 // pred_check_branch
      %12 = sbr.rel (0) target = $region5
    $region4: #{tpu_custom_call.1} parent=1 // pred_region
      %14 = vsyncadd [#allocation3], 64
      %s15 = sshll.u32 %s0, 4
      %s16 = int_to_ptr.hbm [resolvable:$true] %s15
      %s17 = sshll.u32 [#allocation2], 4
      %s18 = int_to_ptr.vmem [resolvable:$true] %s17
      %23 = dma.hbm_to_vmem [thread:$0]  %s16, 64, %s18, [#allocation3], 64, 64, 4
    $region5: #{tpu_custom_call.1} parent=1 // pred_fallthru
      _
    // Predicated region
    $region6: #{tpu_custom_call.1} parent=1 // pred_check
      _
    $region7: #{tpu_custom_call.1} parent=1 // pred_check_branch
      %25 = sbr.rel (0) target = $region9
    $region8: #{tpu_custom_call.1} parent=1 // pred_region
      %27 = vsyncadd [#allocation6], 0
      %s29 = sshll.u32 %s1, 4
      %s30 = int_to_ptr.hbm [resolvable:$true] %s29
      %s31 = sshll.u32 [#allocation5], 4
      %s32 = int_to_ptr.vmem [resolvable:$true] %s31
      %34 = dma.hbm_to_vmem [thread:$0]  %s30, 16, %s32, [#allocation6]
    $region9: #{tpu_custom_call.1} parent=1 // pred_fallthru
      _
    // Predicated region
    $region10: #{tpu_custom_call.1} parent=1 // pred_check
      _
    $region11: #{tpu_custom_call.1} parent=1 // pred_check_branch
      %36 = sbr.rel (0) target = $region13
    $region12: #{tpu_custom_call.1} parent=1 // pred_region
      %38 = vsyncadd [#allocation6], 0
      %s39 = sshll.u32 %s2, 4
      %s40 = int_to_ptr.hbm [resolvable:$true] %s39
      %s41 = sshll.u32 [#allocation7], 4
      %s42 = int_to_ptr.vmem [resolvable:$true] %s41
      %47 = dma.hbm_to_vmem [thread:$0]  %s40, 1024, %s42, [#allocation6], 64, 64, 4
    $region13: #{tpu_custom_call.1} parent=1 // pred_fallthru
      _
    // Predicated region
    $region14: #{tpu_custom_call.1} parent=1 // pred_check
      _
    $region15: #{tpu_custom_call.1} parent=1 // pred_check_branch
      %49 = sbr.rel (0) target = $region17
    $region16: #{tpu_custom_call.1} parent=1 // pred_region
      %51 = dma.done [#allocation3], 128
    $region17: #{tpu_custom_call.1} parent=1 // pred_fallthru
      _
    // Predicated region
    $region18: #{tpu_custom_call.1} parent=1 // pred_check
      _
    $region19: #{tpu_custom_call.1} parent=1 // pred_check_branch
      %53 = sbr.rel (0) target = $region21
    $region20: #{tpu_custom_call.1} parent=1 // pred_region
      %55 = dma.done [#allocation6], 16
    $region21: #{tpu_custom_call.1} parent=1 // pred_fallthru
      _
    // Predicated region
    $region22: #{tpu_custom_call.1} parent=1 // pred_check
      _
    $region23: #{tpu_custom_call.1} parent=1 // pred_check_branch
      %57 = sbr.rel (0) target = $region25
    $region24: #{tpu_custom_call.1} parent=1 // pred_region
      %59 = dma.done [#allocation6], 1024
    $region25: #{tpu_custom_call.1} parent=1 // pred_fallthru
      _
    %v60 = vld [vmem:[#allocation2] sm:$0xff]
    %v61 = vmul.f32 %v60, %v60
    %v62 = vpack.c.bf16 %v61, %v61
    %v63 = vunpack.c.l.bf16 %v62
    %v64 = vsub.f32 %v61, %v63
    %v65 = vpack.c.bf16 %v64, %v64
    %v66 = vld [vmem:[#allocation7] sm:$0xf]
    %v67 = vld [vmem:[#allocation7 + $0x4] sm:$0xf]
    %v68 = vld [vmem:[#allocation7 + $0x8] sm:$0xf]
    %v69 = vld [vmem:[#allocation7 + $0xc] sm:$0xf]
    %v70 = vld [vmem:[#allocation7 + $0x10] sm:$0xf]
    %v71 = vld [vmem:[#allocation7 + $0x14] sm:$0xf]
    %v72 = vld [vmem:[#allocation7 + $0x18] sm:$0xf]
    %v73 = vld [vmem:[#allocation7 + $0x1c] sm:$0xf]
    %v74 = vld [vmem:[#allocation7 + $0x20] sm:$0xf]
    %v75 = vld [vmem:[#allocation7 + $0x24] sm:$0xf]
    %v76 = vld [vmem:[#allocation7 + $0x28] sm:$0xf]
    %v77 = vld [vmem:[#allocation7 + $0x2c] sm:$0xf]
    %v78 = vld [vmem:[#allocation7 + $0x30] sm:$0xf]
    %v79 = vld [vmem:[#allocation7 + $0x34] sm:$0xf]
    %v80 = vld [vmem:[#allocation7 + $0x38] sm:$0xf]
    %v81 = vld [vmem:[#allocation7 + $0x3c] sm:$0xf]
    %v98 = vunpack.c.l.b16 %v66
    %v99 = vunpack.c.l.b16 %v67
    %v100 = vunpack.c.l.b16 %v68
    %v101 = vunpack.c.l.b16 %v69
    %v102 = vunpack.c.l.b16 %v70
    %v103 = vunpack.c.l.b16 %v71
    %v104 = vunpack.c.l.b16 %v72
    %v105 = vunpack.c.l.b16 %v73
    %v106 = vunpack.c.l.b16 %v74
    %v107 = vunpack.c.l.b16 %v75
    %v108 = vunpack.c.l.b16 %v76
    %v109 = vunpack.c.l.b16 %v77
    %v110 = vunpack.c.l.b16 %v78
    %v111 = vunpack.c.l.b16 %v79
    %v112 = vunpack.c.l.b16 %v80
    %v113 = vunpack.c.l.b16 %v81
    %v114 = vpack.c.b16 %v99, %v98
    %v115 = vpack.c.b16 %v101, %v100
    %v116 = vpack.c.b16 %v103, %v102
    %v117 = vpack.c.b16 %v105, %v104
    %v118 = vpack.c.b16 %v107, %v106
    %v119 = vpack.c.b16 %v109, %v108
    %v120 = vpack.c.b16 %v111, %v110
    %v121 = vpack.c.b16 %v113, %v112
    %130 = vmatpush.bf16.msra.mxu0 %v121
    %131 = vmatpush.bf16.msra.mxu0 %v120
    %132 = vmatpush.bf16.msra.mxu0 %v119
    %133 = vmatpush.bf16.msra.mxu0 %v118
    %134 = vmatpush.bf16.msra.mxu0 %v117
    %135 = vmatpush.bf16.msra.mxu0 %v116
    %136 = vmatpush.bf16.msra.mxu0 %v115
    %137 = vmatpush.bf16.msra.mxu0 %v114
    %138 = vmatmul.bf16.gmra.mxu0 %v65
    %v139 = vpop.f32.mrf.mxu0
    %v140 = vadd.f32 0.0, %v139
    %v141 = vpop.f32.mrf.mxu0
    %142 = vdwg.mxu0
    %143 = vmatpush.bf16.msra.mxu0 %v121
    %144 = vmatpush.bf16.msra.mxu0 %v120
    %145 = vmatpush.bf16.msra.mxu0 %v119
    %146 = vmatpush.bf16.msra.mxu0 %v118
    %147 = vmatpush.bf16.msra.mxu0 %v117
    %148 = vmatpush.bf16.msra.mxu0 %v116
    %149 = vmatpush.bf16.msra.mxu0 %v115
    %150 = vmatpush.bf16.msra.mxu0 %v114
    %151 = vmatmul.bf16.gmra.mxu0 %v62
    %v152 = vpop.f32.mrf.mxu0
    %v153 = vadd.f32 %v140, %v152
    %v154 = vpop.f32.mrf.mxu0
    %155 = vdwg.mxu0
    %v156 = vmul.f32 %v153, 0.03125
    %v157 = vadd.f32 %v156, 1e-08
    %v158 = vrsqrt.pop %v157
    %v159 = vmul.f32 %v158, %v157
    %v160 = vmul.f32 %v159, %v158
    %v161 = vmul.f32 0.5, %v160
    %v162 = vsub.f32 1.5, %v161
    %v163 = vmul.f32 %v158, %v162
    %vm164 = vweird.f32 %v157
    %vm165 = vweird.f32 %v158
    %vm166 = vmor %vm164, %vm165
    %v167 = vsel %vm166, %v158, %v163
    %v168 = vmul.f32 %v60, %v167
    %v169 = vld [vmem:[#allocation5] sm:$0x1]
    %v171 = vperm.slane %v169, 0
    %v173 = vmul.f32 %v168, %v171
    %174 = vst [vmem:[#allocation8] sm:$0xff] %v173
    // Predicated region
    $region26: #{tpu_custom_call.1} parent=1 // pred_check
      _
    $region27: #{tpu_custom_call.1} parent=1 // pred_check_branch
      %176 = sbr.rel (0) target = $region29
    $region28: #{tpu_custom_call.1} parent=1 // pred_region
      %178 = vsyncadd [#allocation4], 64
      %s179 = sshll.u32 [#allocation8], 4
      %s180 = int_to_ptr.vmem [resolvable:$true] %s179
      %s181 = sshll.u32 %s3, 4
      %s182 = int_to_ptr.hbm [resolvable:$true] %s181
      %187 = dma.vmem_to_hbm [thread:$0]  %s180, 64, %s182, [#allocation4], 64, 64, 4
    $region29: #{tpu_custom_call.1} parent=1 // pred_fallthru
      _
    // Predicated region
    $region30: #{tpu_custom_call.1} parent=1 // pred_check
      _
    $region31: #{tpu_custom_call.1} parent=1 // pred_check_branch
      %189 = sbr.rel (0) target = $region33
    $region32: #{tpu_custom_call.1} parent=1 // pred_region
      %191 = dma.done [#allocation4], 128
    $region33: #{tpu_custom_call.1} parent=1 // pred_fallthru
      _
    %192 = vsyncpa [#allocation3], 1
    %193 = vsyncpa [#allocation6], 1
    %194 = vsyncpa [#allocation4], 1

</llo_original>
